<compile_context>
chip_gen: v5e
topology: v5e:2x2
jax: 0.10.0
libtpu: 0.0.40
codegen_flags: <defaults>
</compile_context>

<pallas_src>
import jax
import jax.numpy as jnp
from jax import lax
from jax.experimental import pallas as pl
from jax.experimental.pallas import tpu as pltpu


# ---------------------------------------------------------------------------
# Kernels
# ---------------------------------------------------------------------------

def _ffn_kernel_resident(x_ref, w1_ref, b1_ref, w2_ref, b2_ref, o_ref):
    """Weights fully VMEM-resident: single pass per row tile, no accumulator."""
    x = x_ref[...].astype(w1_ref.dtype)                     # per-tile cast (VPU, free-ish)
    # fc1: (tm, emb) . (hidden, emb)^T -> (tm, hidden), f32 accumulation on the MXU.
    h = lax.dot_general(
        x, w1_ref[...],
        dimension_numbers=(((1,), (1,)), ((), ())),
        preferred_element_type=jnp.float32,
    )
    h = jnp.maximum(h + b1_ref[...], 0.0)                   # bias + ReLU epilogue in f32
    # Dropout: nn.Dropout in eval mode is identity (inference semantics).
    # TODO(synk): training-mode dropout would build the mask in-kernel with
    # pltpu.prng_seed + pltpu.prng_random_bits on the (tm, hidden) tile.
    # fc2: (tm, hidden) . (emb, hidden)^T -> (tm, emb).
    y = lax.dot_general(
        h.astype(w2_ref.dtype), w2_ref[...],
        dimension_numbers=(((1,), (1,)), ((), ())),
        preferred_element_type=jnp.float32,
    )
    o_ref[...] = (y + b2_ref[...]).astype(o_ref.dtype)


def _ffn_kernel_tiled(x_ref, w1_ref, b1_ref, w2_ref, b2_ref, o_ref, acc_ref):
    """Hidden axis tiled: accumulate fc2 partials over hidden tiles in f32 scratch."""
    j = pl.program_id(1)

    x = x_ref[...].astype(w1_ref.dtype)
    h = lax.dot_general(
        x, w1_ref[...],
        dimension_numbers=(((1,), (1,)), ((), ())),
        preferred_element_type=jnp.float32,
    )
    h = jnp.maximum(h + b1_ref[...], 0.0)
    # Dropout: identity in eval mode (see TODO above).
    part = lax.dot_general(
        h.astype(w2_ref.dtype), w2_ref[...],
        dimension_numbers=(((1,), (1,)), ((), ())),
        preferred_element_type=jnp.float32,
    )

    # Assign on the first hidden step (saves a zero-fill + an acc read), add afterwards.
    @pl.when(j == 0)
    def _():
        acc_ref[...] = part

    @pl.when(j > 0)
    def _():
        acc_ref[...] += part

    @pl.when(j == pl.num_programs(1) - 1)
    def _():
        o_ref[...] = (acc_ref[...] + b2_ref[...]).astype(o_ref.dtype)


# ---------------------------------------------------------------------------
# Tile selection / VMEM budgeting
# ---------------------------------------------------------------------------

def _footprint_bytes(tm, th, emb, xbytes, cbytes, obytes, resident):
    est = 2 * tm * emb * xbytes            # x tiles (double-buffered, input dtype)
    est += 2 * th * emb * cbytes           # W1 tiles (Pallas double-buffers inputs)
    est += 2 * emb * th * cbytes           # W2 tiles
    est += 2 * (th + emb) * 4              # bias tiles (f32)
    est += 2 * tm * emb * obytes           # output tiles
    est += tm * th * (4 + cbytes)          # fc1 f32 intermediate + compute-dtype cast
    est += tm * emb * 4                    # fc2 f32 result before epilogue cast
    if not resident:
        est += tm * emb * 4                # f32 accumulator scratch
    return est


def _select_tiles(M, emb, hidden, xbytes, cbytes, obytes, budget):
    # Row-tile candidates, largest first (arithmetic intensity vs streamed weights ~ tm).
    cands = []
    if M <= 1024:
        cands.append(M)                    # single full-M block (exempt from sublane rule)
    cands += [t for t in (1024, 768, 512, 384, 256, 128, 64, 32, 16) if t < M]
    if not cands:
        cands = [M]

    # 1) Prefer fully VMEM-resident weights: hidden grid collapses, weights DMA'd once.
    for tm in cands:
        if _footprint_bytes(tm, hidden, emb, xbytes, cbytes, obytes, True) <= budget:
            return tm, hidden

    # 2) Otherwise tile the hidden axis: maximize tm first, then the largest
    #    128-multiple divisor of hidden that fits.
    th_cands = [t for t in range(hidden - hidden % 128, 127, -128) if hidden % t == 0]
    if not th_cands:
        th_cands = [hidden]
    for tm in cands:
        for th in th_cands:
            if _footprint_bytes(tm, th, emb, xbytes, cbytes, obytes, False) <= budget:
                return tm, th

    # 3) Last resort: smallest tiles.
    return cands[-1], th_cands[-1]


# ---------------------------------------------------------------------------
# Wrapper
# ---------------------------------------------------------------------------

def feed_forward(x, w1, b1, w2, b2, *, tm=None, th=None,
                 compute_dtype=jnp.bfloat16, out_dtype=None):
    """x: (..., emb). w1: (hidden, emb), b1: (hidden,), w2: (emb, hidden), b2: (emb,)
    — native torch.nn.Linear layouts (no wrapper-side transpose). Dropout is eval-mode
    identity. For best performance pre-cast w1/w2 to `compute_dtype` once at setup."""
    orig_shape = x.shape
    emb = orig_shape[-1]
    hidden = w1.shape[0]
    M = 1
    for d in orig_shape[:-1]:
        M *= d
    out_dtype = x.dtype if out_dtype is None else out_dtype

    x2d = x.reshape(M, emb)                                  # metadata only, no extra HBM pass
    w1c = w1 if w1.dtype == compute_dtype else w1.astype(compute_dtype)
    w2c = w2 if w2.dtype == compute_dtype else w2.astype(compute_dtype)
    b1_2d = b1.reshape(1, hidden).astype(jnp.float32)
    b2_2d = b2.reshape(1, emb).astype(jnp.float32)

    xbytes = jnp.dtype(x.dtype).itemsize
    cbytes = jnp.dtype(compute_dtype).itemsize
    obytes = jnp.dtype(out_dtype).itemsize

    # Derive the VMEM budget from the actual device (64 MiB on v7x, 128 MiB on v5e/v6e).
    try:
        vmem_cap = int(pltpu.get_tpu_info().vmem_capacity_bytes)
    except Exception:
        vmem_cap = 64 << 20                                  # conservative fallback
    budget = int(vmem_cap * 0.8)

    if tm is None or th is None:
        auto_tm, auto_th = _select_tiles(M, emb, hidden, xbytes, cbytes, obytes, budget)
        tm = auto_tm if tm is None else tm
        th = auto_th if th is None else th

    # Row tile: full-M single block, or a multiple of 16 (bf16 sublane packing).
    tm_eff = M if tm >= M else max(16, (tm // 16) * 16)
    # Hidden tile must divide hidden (partial weight tiles would corrupt the reduction).
    if hidden % th:
        th = hidden
    resident = (th == hidden)

    rows = pl.cdiv(M, tm_eff)
    est = _footprint_bytes(tm_eff, th, emb, xbytes, cbytes, obytes, resident)
    vmem_limit = min(max(int(est) + (4 << 20), 32 << 20), int(vmem_cap * 0.9))

    if resident:
        grid = (rows,)
        in_specs = [
            pl.BlockSpec((tm_eff, emb), lambda i: (i, 0)),        # x row tile
            pl.BlockSpec((hidden, emb), lambda i: (0, 0)),        # W1 resident (constant)
            pl.BlockSpec((1, hidden), lambda i: (0, 0)),          # b1
            pl.BlockSpec((emb, hidden), lambda i: (0, 0)),        # W2 resident (constant)
            pl.BlockSpec((1, emb), lambda i: (0, 0)),             # b2
        ]
        out_specs = pl.BlockSpec((tm_eff, emb), lambda i: (i, 0))
        scratch = ()
        kernel = _ffn_kernel_resident
        dims = ("parallel",)
    else:
        grid = (rows, hidden // th)
        in_specs = [
            pl.BlockSpec((tm_eff, emb), lambda i, j: (i, 0)),     # x row tile
            pl.BlockSpec((th, emb), lambda i, j: (j, 0)),         # W1 hidden tile
            pl.BlockSpec((1, th), lambda i, j: (0, j)),           # b1 hidden tile
            pl.BlockSpec((emb, th), lambda i, j: (0, j)),         # W2 hidden tile
            pl.BlockSpec((1, emb), lambda i, j: (0, 0)),          # b2
        ]
        out_specs = pl.BlockSpec((tm_eff, emb), lambda i, j: (i, 0))
        scratch = (pltpu.VMEM((tm_eff, emb), jnp.float32),)
        kernel = _ffn_kernel_tiled
        dims = ("parallel", "arbitrary")

    out2d = pl.pallas_call(
        kernel,
        out_shape=jax.ShapeDtypeStruct((M, emb), out_dtype),
        grid_spec=pltpu.PrefetchScalarGridSpec(
            num_scalar_prefetch=0,
            grid=grid,
            in_specs=in_specs,
            out_specs=out_specs,
            scratch_shapes=scratch,
        ),
        compiler_params=pltpu.CompilerParams(
            dimension_semantics=dims,
            vmem_limit_bytes=int(vmem_limit),
        ),
    )(x2d, w1c, b1_2d, w2c, b2_2d)

    return out2d.reshape(orig_shape)


# ---------------------------------------------------------------------------
# Demo / self-test
# ---------------------------------------------------------------------------

def _init_params(key, emb_size, expansion):
    """Deterministic init mimicking torch.nn.Linear's uniform(-1/sqrt(fan_in), +)."""
    hidden = expansion * emb_size
    k1, k2, k3, k4 = jax.random.split(key, 4)
    bound1 = 1.0 / jnp.sqrt(emb_size)
    bound2 = 1.0 / jnp.sqrt(hidden)
    w1 = jax.random.uniform(k1, (hidden, emb_size), jnp.float32, -bound1, bound1)
    b1 = jax.random.uniform(k2, (hidden,), jnp.float32, -bound1, bound1)
    w2 = jax.random.uniform(k3, (emb_size, hidden), jnp.float32, -bound2, bound2)
    b2 = jax.random.uniform(k4, (emb_size,), jnp.float32, -bound2, bound2)
    return w1, b1, w2, b2


def _ref(x, w1, b1, w2, b2):
    return jnp.maximum(x @ w1.T + b1, 0.0) @ w2.T + b2


if __name__ == "__main__":
    emb_size, expansion, dropout = 32, 4, 0.1
    batch, seq = 2, 8

    key = jax.random.PRNGKey(0)
    kx, kp = jax.random.split(key)
    x = jax.random.normal(kx, (batch, seq, emb_size), jnp.float32)
    w1, b1, w2, b2 = _init_params(kp, emb_size, expansion)
    ref = _ref(x, w1, b1, w2, b2)

    # 1) f32 compute path, auto tiles (weights VMEM-resident, single hidden step).
    out_f32 = jax.block_until_ready(
        feed_forward(x, w1, b1, w2, b2, compute_dtype=jnp.float32))
    assert out_f32.shape == (batch, seq, emb_size)
    assert jnp.allclose(out_f32, ref, atol=1e-5, rtol=1e-5)

    # 2) bf16 compute path with weights pre-cast ONCE at parameter setup (no per-call cast).
    w1_bf16, w2_bf16 = w1.astype(jnp.bfloat16), w2.astype(jnp.bfloat16)
    out_bf16 = jax.block_until_ready(feed_forward(x, w1_bf16, b1, w2_bf16, b2))
    assert out_bf16.shape == (batch, seq, emb_size)
    assert jnp.allclose(out_bf16.astype(jnp.float32), ref, atol=5e-2, rtol=5e-2)

    # 3) ragged row count (M = 20): auto selection uses a single full-M row block, no padding.
    x_r = jax.random.normal(jax.random.PRNGKey(1), (2, 10, emb_size), jnp.float32)
    ref_r = _ref(x_r, w1, b1, w2, b2)
    out_r = jax.block_until_ready(
        feed_forward(x_r, w1, b1, w2, b2, compute_dtype=jnp.float32))
    assert out_r.shape == x_r.shape
    assert jnp.allclose(out_r, ref_r, atol=1e-5, rtol=1e-5)

    # 4) forced row + hidden tiling to exercise the accumulator (pl.when assign/add) path.
    emb2, exp2 = 64, 4                          # hidden = 256
    kx2, kp2 = jax.random.split(jax.random.PRNGKey(2))
    x_t = jax.random.normal(kx2, (4, 16, emb2), jnp.float32)     # M = 64
    w1t, b1t, w2t, b2t = _init_params(kp2, emb2, exp2)
    ref_t = _ref(x_t, w1t, b1t, w2t, b2t)
    out_t = jax.block_until_ready(
        feed_forward(x_t, w1t, b1t, w2t, b2t, tm=32, th=128,
                     compute_dtype=jnp.float32))                 # grid (2 rows, 2 hidden)
    assert out_t.shape == x_t.shape
    assert jnp.allclose(out_t, ref_t, atol=1e-5, rtol=1e-5)

    print("KERNEL_OK")
</pallas_src>

<mosaic_0001>
module attributes {stable_mosaic.version = 11 : i64} {
  func.func @_ffn_kernel_resident(%arg0: i32, %arg1: memref<16x32xf32, #tpu.memory_space<vmem>>, %arg2: memref<128x32xf32, #tpu.memory_space<vmem>>, %arg3: memref<1x128xf32, #tpu.memory_space<vmem>>, %arg4: memref<32x128xf32, #tpu.memory_space<vmem>>, %arg5: memref<1x32xf32, #tpu.memory_space<vmem>>, %arg6: memref<16x32xf32, #tpu.memory_space<vmem>>) attributes {dimension_semantics = [#tpu.dimension_semantics<parallel>], iteration_bounds = array<i64: 1>, scalar_prefetch = 0 : i64, scratch_operands = 0 : i64, tpu.core_type = #tpu.core_type<tc>, window_params = [{transform_indices = @transform_0, window_bounds = array<i64: 16, 32>}, {pipeline_mode = #tpu.pipeline_mode<synchronous>, transform_indices = @transform_1, window_bounds = array<i64: 128, 32>}, {pipeline_mode = #tpu.pipeline_mode<synchronous>, transform_indices = @transform_2, window_bounds = array<i64: 1, 128>}, {pipeline_mode = #tpu.pipeline_mode<synchronous>, transform_indices = @transform_3, window_bounds = array<i64: 32, 128>}, {pipeline_mode = #tpu.pipeline_mode<synchronous>, transform_indices = @transform_4, window_bounds = array<i64: 1, 32>}, {transform_indices = @transform_5, window_bounds = array<i64: 16, 32>}]} {
    %c0 = arith.constant 0 : index
    %c0_0 = arith.constant 0 : index
    %0 = vector.load %arg1[%c0, %c0_0] : memref<16x32xf32, #tpu.memory_space<vmem>>, vector<16x32xf32>
    %c0_1 = arith.constant 0 : index
    %c0_2 = arith.constant 0 : index
    %1 = vector.load %arg2[%c0_1, %c0_2] : memref<128x32xf32, #tpu.memory_space<vmem>>, vector<128x32xf32>
    %cst = arith.constant dense<0.000000e+00> : vector<16x128xf32>
    %2 = tpu.matmul %0, %1, %cst {dimension_numbers = #tpu.dot_dimension_numbers<[1], [1], [0], [0], [0, 0, 1, 0], [], []>} : vector<16x32xf32>, vector<128x32xf32>, vector<16x128xf32> -> vector<16x128xf32>
    %c0_3 = arith.constant 0 : index
    %c0_4 = arith.constant 0 : index
    %3 = vector.load %arg3[%c0_3, %c0_4] : memref<1x128xf32, #tpu.memory_space<vmem>>, vector<1x128xf32>
    %4 = vector.broadcast %3 : vector<1x128xf32> to vector<16x128xf32>
    %5 = arith.addf %2, %4 : vector<16x128xf32>
    %cst_5 = arith.constant 0.000000e+00 : f32
    %6 = vector.broadcast %cst_5 : f32 to vector<16x128xf32>
    %7 = arith.maximumf %5, %6 : vector<16x128xf32>
    %c0_6 = arith.constant 0 : index
    %c0_7 = arith.constant 0 : index
    %8 = vector.load %arg4[%c0_6, %c0_7] : memref<32x128xf32, #tpu.memory_space<vmem>>, vector<32x128xf32>
    %cst_8 = arith.constant dense<0.000000e+00> : vector<16x32xf32>
    %9 = tpu.matmul %7, %8, %cst_8 {dimension_numbers = #tpu.dot_dimension_numbers<[1], [1], [0], [0], [0, 0, 1, 0], [], []>} : vector<16x128xf32>, vector<32x128xf32>, vector<16x32xf32> -> vector<16x32xf32>
    %c0_9 = arith.constant 0 : index
    %c0_10 = arith.constant 0 : index
    %10 = vector.load %arg5[%c0_9, %c0_10] : memref<1x32xf32, #tpu.memory_space<vmem>>, vector<1x32xf32>
    %11 = vector.broadcast %10 : vector<1x32xf32> to vector<16x32xf32>
    %12 = arith.addf %9, %11 : vector<16x32xf32>
    %c0_11 = arith.constant 0 : index
    %c0_12 = arith.constant 0 : index
    %13 = vector.load %arg6[%c0_11, %c0_12] : memref<16x32xf32, #tpu.memory_space<vmem>>, vector<16x32xf32>
    tpu.vector_store %arg6[%c0_11, %c0_12], %12 {strides = array<i32>} : memref<16x32xf32, #tpu.memory_space<vmem>>, vector<16x32xf32>,
    return
  }
  func.func @transform_0(%arg0: i32) -> (i32, i32) {
    %c0_i32 = arith.constant 0 : i32
    %c0_i32_0 = arith.constant 0 : i32
    return %arg0, %c0_i32 : i32, i32
  }
  func.func @transform_1(%arg0: i32) -> (i32, i32) {
    %c0_i32 = arith.constant 0 : i32
    %c0_i32_0 = arith.constant 0 : i32
    %c0_i32_1 = arith.constant 0 : i32
    return %c0_i32, %c0_i32_0 : i32, i32
  }
  func.func @transform_2(%arg0: i32) -> (i32, i32) {
    %c0_i32 = arith.constant 0 : i32
    %c0_i32_0 = arith.constant 0 : i32
    %c0_i32_1 = arith.constant 0 : i32
    return %c0_i32, %c0_i32_0 : i32, i32
  }
  func.func @transform_3(%arg0: i32) -> (i32, i32) {
    %c0_i32 = arith.constant 0 : i32
    %c0_i32_0 = arith.constant 0 : i32
    %c0_i32_1 = arith.constant 0 : i32
    return %c0_i32, %c0_i32_0 : i32, i32
  }
  func.func @transform_4(%arg0: i32) -> (i32, i32) {
    %c0_i32 = arith.constant 0 : i32
    %c0_i32_0 = arith.constant 0 : i32
    %c0_i32_1 = arith.constant 0 : i32
    return %c0_i32, %c0_i32_0 : i32, i32
  }
  func.func @transform_5(%arg0: i32) -> (i32, i32) {
    %c0_i32 = arith.constant 0 : i32
    %c0_i32_0 = arith.constant 0 : i32
    return %arg0, %c0_i32 : i32, i32
  }
}

</mosaic_0001>

<llo_original>
// kernel: tpu_custom_call.1
$region0: #{tpu_custom_call.1}
  #allocation0 [shape = 'u32[]', space=smem, size = 0x4, offset = 0x4, fixed_abs, tag = 'smem constant byte address 0x4 - core index']
  #allocation1 [shape = 'u32[72,128]{1,0:T(1,128)}', space=vmem, size = 0x9000, scoped, tag = 'internal scratch']
  %s0 = inlined_call_operand.vmem [shape: f32[16,32], index: 0, kind: input, shape index: {}]
  %s1 = inlined_call_operand.vmem [shape: f32[128,32], index: 1, kind: input, shape index: {}]
  %s2 = inlined_call_operand.vmem [shape: f32[1,128], index: 2, kind: input, shape index: {}]
  %s3 = inlined_call_operand.vmem [shape: f32[32,128], index: 3, kind: input, shape index: {}]
  %s4 = inlined_call_operand.vmem [shape: f32[1,32], index: 4, kind: input, shape index: {}]
  %s5 = inlined_call_operand.hbm [shape: f32[16,32], index: 5, kind: output, shape index: {}]
  %s6 = sld [smem:[#allocation0]]
  $region30: #{tpu_custom_call.1} parent=0
    _
  %s8 = ssub.s32 1, %s6
  %s9 = scalar_select 0, %s8, %s6
  $region1: #{tpu_custom_call.1} parent=0
    #allocation2 [shape = 'u8[8192]{0}', space=vmem, size = 0x2000, scoped, tag = 'output window, operand 0, single buffered']
    #allocation3 [shape = 's32[1]{0}', space=sflag, size = 0x4, scoped, tag = 'scoped memory for tpu_custom_call.1']
    %10 = vsyncpa [#allocation3], 0
    // Predicated region
    $region2: #{tpu_custom_call.1} parent=1 // pred_check
      _
    $region3: #{tpu_custom_call.1} parent=1 // pred_check_branch
      %12 = sbr.rel (0) target = $region5
    $region4: #{tpu_custom_call.1} parent=1 // pred_region
      _
    $region5: #{tpu_custom_call.1} parent=1 // pred_fallthru
      _
    // Predicated region
    $region6: #{tpu_custom_call.1} parent=1 // pred_check
      _
    $region7: #{tpu_custom_call.1} parent=1 // pred_check_branch
      %14 = sbr.rel (0) target = $region9
    $region8: #{tpu_custom_call.1} parent=1 // pred_region
      _
    $region9: #{tpu_custom_call.1} parent=1 // pred_fallthru
      _
    // Predicated region
    $region10: #{tpu_custom_call.1} parent=1 // pred_check
      _
    $region11: #{tpu_custom_call.1} parent=1 // pred_check_branch
      %16 = sbr.rel (0) target = $region13
    $region12: #{tpu_custom_call.1} parent=1 // pred_region
      _
    $region13: #{tpu_custom_call.1} parent=1 // pred_fallthru
      _
    // Predicated region
    $region14: #{tpu_custom_call.1} parent=1 // pred_check
      _
    $region15: #{tpu_custom_call.1} parent=1 // pred_check_branch
      %18 = sbr.rel (0) target = $region17
    $region16: #{tpu_custom_call.1} parent=1 // pred_region
      _
    $region17: #{tpu_custom_call.1} parent=1 // pred_fallthru
      _
    // Predicated region
    $region18: #{tpu_custom_call.1} parent=1 // pred_check
      _
    $region19: #{tpu_custom_call.1} parent=1 // pred_check_branch
      %20 = sbr.rel (0) target = $region21
    $region20: #{tpu_custom_call.1} parent=1 // pred_region
      _
    $region21: #{tpu_custom_call.1} parent=1 // pred_fallthru
      _
    %v21 = vld [vmem:[%s0] sm:$0xff]
    %v22 = vld [vmem:[%s0 + $0x8] sm:$0xff]
    %v23 = vld [vmem:[%s1] sm:$0xff]
    %v24 = vld [vmem:[%s1 + $0x8] sm:$0xff]
    %v25 = vld [vmem:[%s1 + $0x10] sm:$0xff]
    %v26 = vld [vmem:[%s1 + $0x18] sm:$0xff]
    %v27 = vld [vmem:[%s1 + $0x20] sm:$0xff]
    %v28 = vld [vmem:[%s1 + $0x28] sm:$0xff]
    %v29 = vld [vmem:[%s1 + $0x30] sm:$0xff]
    %v30 = vld [vmem:[%s1 + $0x38] sm:$0xff]
    %v31 = vld [vmem:[%s1 + $0x40] sm:$0xff]
    %v32 = vld [vmem:[%s1 + $0x48] sm:$0xff]
    %v33 = vld [vmem:[%s1 + $0x50] sm:$0xff]
    %v34 = vld [vmem:[%s1 + $0x58] sm:$0xff]
    %v35 = vld [vmem:[%s1 + $0x60] sm:$0xff]
    %v36 = vld [vmem:[%s1 + $0x68] sm:$0xff]
    %v37 = vld [vmem:[%s1 + $0x70] sm:$0xff]
    %v38 = vld [vmem:[%s1 + $0x78] sm:$0xff]
    %v39 = vld [vmem:[%s2] sm:$0x1]
    %v41 = vperm.slane %v39, 0
    %vm43 = vcmask 261120
    %v45 = vsel %vm43, %v21, 0
    %v48 = vsel %vm43, %v22, 0
    %v51 = vsel %vm43, %v23, 0
    %v54 = vsel %vm43, %v24, 0
    %v57 = vsel %vm43, %v25, 0
    %v60 = vsel %vm43, %v26, 0
    %v63 = vsel %vm43, %v27, 0
    %v66 = vsel %vm43, %v28, 0
    %v69 = vsel %vm43, %v29, 0
    %v72 = vsel %vm43, %v30, 0
    %v75 = vsel %vm43, %v31, 0
    %v78 = vsel %vm43, %v32, 0
    %v81 = vsel %vm43, %v33, 0
    %v84 = vsel %vm43, %v34, 0
    %v87 = vsel %vm43, %v35, 0
    %v90 = vsel %vm43, %v36, 0
    %v93 = vsel %vm43, %v37, 0
    %v96 = vsel %vm43, %v38, 0
    %98 = vmatpush.xpose.msra.mxu0 %v96
    %99 = vmatpush.xpose.msra.mxu0 %v93
    %100 = vmatpush.xpose.msra.mxu0 %v90
    %101 = vmatpush.xpose.msra.mxu0 %v87
    %102 = vmatpush.xpose.msra.mxu0 %v84
    %103 = vmatpush.xpose.msra.mxu0 %v81
    %104 = vmatpush.xpose.msra.mxu0 %v78
    %105 = vmatpush.xpose.msra.mxu0 %v75
    %106 = vmatpush.xpose.msra.mxu0 %v72
    %107 = vmatpush.xpose.msra.mxu0 %v69
    %108 = vmatpush.xpose.msra.mxu0 %v66
    %109 = vmatpush.xpose.msra.mxu0 %v63
    %110 = vmatpush.xpose.msra.mxu0 %v60
    %111 = vmatpush.xpose.msra.mxu0 %v57
    %112 = vmatpush.xpose.msra.mxu0 %v54
    %113 = vmatpush.xpose.msra.mxu0 %v51
    %114 = vmatmul.f32.gmra.mxu0 %v45
    %v115 = vpop.f32.mrf.mxu0
    %v116 = vadd.f32 %v41, %v115
    %117 = vmatmul.f32.gmra.mxu0 %v48
    %v118 = vpop.f32.mrf.mxu0
    %v119 = vadd.f32 %v41, %v118
    %120 = vdwg.mxu0
    %v121 = vmax.f32 %v116, 0.0
    %v122 = vmax.f32 %v119, 0.0
    %v123 = vld [vmem:[%s3] sm:$0xff]
    %v124 = vld [vmem:[%s3 + $0x8] sm:$0xff]
    %v125 = vld [vmem:[%s3 + $0x10] sm:$0xff]
    %v126 = vld [vmem:[%s3 + $0x18] sm:$0xff]
    %v127 = vld [vmem:[%s4] sm:$0x1]
    %v129 = vperm.slane %v127, 0
    %131 = vmatpush.xpose.msra.mxu0 0.0
    %132 = vmatpush.xpose.msra.mxu0 0.0
    %133 = vmatpush.xpose.msra.mxu0 0.0
    %134 = vmatpush.xpose.msra.mxu0 0.0
    %135 = vmatpush.xpose.msra.mxu0 0.0
    %136 = vmatpush.xpose.msra.mxu0 0.0
    %137 = vmatpush.xpose.msra.mxu0 0.0
    %138 = vmatpush.xpose.msra.mxu0 0.0
    %139 = vmatpush.xpose.msra.mxu0 0.0
    %140 = vmatpush.xpose.msra.mxu0 0.0
    %141 = vmatpush.xpose.msra.mxu0 0.0
    %142 = vmatpush.xpose.msra.mxu0 0.0
    %143 = vmatpush.xpose.msra.mxu0 %v126
    %144 = vmatpush.xpose.msra.mxu0 %v125
    %145 = vmatpush.xpose.msra.mxu0 %v124
    %146 = vmatpush.xpose.msra.mxu0 %v123
    %147 = vmatmul.f32.gmra.mxu0 %v121
    %v148 = vpop.f32.mrf.mxu0
    %v149 = vadd.f32 %v129, %v148
    %150 = vmatmul.f32.gmra.mxu0 %v122
    %v151 = vpop.f32.mrf.mxu0
    %v152 = vadd.f32 %v129, %v151
    %153 = vdwg.mxu0
    %154 = vst.msk [vmem:[#allocation2] sm:$0xff] %vm43, %v149
    %155 = vst.msk [vmem:[#allocation2 + $0x8] sm:$0xff] %vm43, %v152
    // Predicated region
    $region22: #{tpu_custom_call.1} parent=1 // pred_check
      _
    $region23: #{tpu_custom_call.1} parent=1 // pred_check_branch
      %157 = sbr.rel (0) target = $region25
    $region24: #{tpu_custom_call.1} parent=1 // pred_region
      %159 = vsyncadd [#allocation3], 0
      %s160 = sshll.u32 [#allocation2], 4
      %s161 = int_to_ptr.vmem [resolvable:$true] %s160
      %s162 = sshll.u32 %s5, 4
      %s163 = int_to_ptr.hbm [resolvable:$true] %s162
      %168 = dma.vmem_to_hbm [thread:$0]  %s161, 256, %s163, [#allocation3], 128, 128, 8
    $region25: #{tpu_custom_call.1} parent=1 // pred_fallthru
      _
    // Predicated region
    $region26: #{tpu_custom_call.1} parent=1 // pred_check
      _
    $region27: #{tpu_custom_call.1} parent=1 // pred_check_branch
      %170 = sbr.rel (0) target = $region29
    $region28: #{tpu_custom_call.1} parent=1 // pred_region
      %172 = dma.done [#allocation3], 256
    $region29: #{tpu_custom_call.1} parent=1 // pred_fallthru
      _
    %173 = vsyncpa [#allocation3], 1

</llo_original>
